<compile_context>
chip_gen: v5e
topology: v5e:2x2
jax: 0.10.0
libtpu: 0.0.40
codegen_flags: <defaults>
</compile_context>

<pallas_src>
import functools

import jax
import jax.numpy as jnp
from jax.experimental import pallas as pl
from jax.experimental.pallas import tpu as pltpu

LANE = 128
_VMEM_BUDGET = 32 * 1024 * 1024   # per-kernel working-set target (v7x-safe)
_VMEM_LIMIT = 48 * 1024 * 1024    # explicit scoped-VMEM limit for both calls


def _round_up(x, m):
    return (x + m - 1) // m * m


def _cdiv(a, b):
    return (a + b - 1) // b


def conv_stats_kernel(e_ref, en_ref, o_ref, w_ref, y_ref, stats_ref, acc_ref,
                      *, tho, wop, ho_valid):
    """Strided 3x3 conv tile (4 MXU matmuls) + per-tile BN partial statistics.

    e_ref : (1, tho*wop, 3C) even padded rows (kh=0 taps; rows >=1 reused for kh=2)
    en_ref: (1, wop,     3C) even padded row just below the tile (kh=2, last row)
    o_ref : (1, tho*wop, 3C) odd padded rows (kh=1 taps)
    w_ref : (3, 3C, Cp)      per-kh weight matrices, C_out zero-padded to Cp lanes
    y_ref : (1, tho*wop, Cp) bf16 conv output tile
    stats_ref: (1, 1, 2, Cp) per-tile [sum ; sum-of-squares], f32
    acc_ref:  (tho*wop, Cp)  f32 VMEM accumulator scratch
    """
    m = tho * wop
    f32 = jnp.float32

    # kh = 0 and kh = 1: one full-tile matmul each (M = tho*wop, K = 3C).
    acc_ref[...] = jnp.dot(e_ref[0], w_ref[0], preferred_element_type=f32)
    acc_ref[...] += jnp.dot(o_ref[0], w_ref[1], preferred_element_type=f32)

    # kh = 2: the same even-row stream shifted down by one output row.
    if tho > 1:
        acc_ref[pl.ds(0, (tho - 1) * wop), :] += jnp.dot(
            e_ref[0, pl.ds(wop, (tho - 1) * wop), :], w_ref[2],
            preferred_element_type=f32)
    acc_ref[pl.ds((tho - 1) * wop, wop), :] += jnp.dot(
        en_ref[0], w_ref[2], preferred_element_type=f32)

    acc = acc_ref[...]
    y_ref[0] = acc.astype(y_ref.dtype)

    # Per-tile statistics: zero-padded output columns contribute exactly 0, so
    # only a partial last row-tile needs masking (static condition).
    if ho_valid % tho != 0:
        rb = pl.program_id(1)
        ri = jax.lax.broadcasted_iota(jnp.int32, (m, 1), 0)
        acc = jnp.where(rb * tho + ri // wop < ho_valid, acc, 0.0)
    stats_ref[0, 0, pl.ds(0, 1), :] = jnp.sum(acc, axis=0, keepdims=True)
    stats_ref[0, 0, pl.ds(1, 1), :] = jnp.sum(acc * acc, axis=0, keepdims=True)


def bn_leaky_kernel(y_ref, scale_ref, shift_ref, o_ref, *, slope):
    """Fused BatchNorm-apply + LeakyReLU: one FMA + one select per element."""
    z = y_ref[...].astype(jnp.float32) * scale_ref[...] + shift_ref[...]
    o_ref[...] = jnp.where(z >= 0, z, slope * z)


def downsample_forward(x, w, b, gamma, beta, *, eps=1e-5, slope=0.01):
    """Forward of DownSample. `b` is accepted but folded away exactly
    (training-mode BatchNorm subtracts the batch mean)."""
    del b
    N, C, H, W = x.shape
    Ho = (H - 1) // 2 + 1
    Wo = (W - 1) // 2 + 1
    Cp = _round_up(C, LANE)            # lane-dense output channels
    Wop = _round_up(Wo, 8)             # sublane-aligned -> layout-free row merge
    C3 = 3 * C

    # ---- tile sizing: target M = tho*Wop ~ 512 rows per matmul, bounded by a
    #      VMEM byte budget re-derived for 64 MiB (v7x) parts. ----
    def vmem1_bytes(t):
        m = t * Wop
        return (2 * 2 * m * C3 * 2        # e, o streams (bf16, double-buffered)
                + 2 * Wop * C3 * 2        # boundary-row stream
                + 2 * 3 * C3 * Cp * 2     # weights (double-buffered)
                + 2 * m * Cp * 2          # y tile (bf16, double-buffered)
                + m * Cp * 4              # f32 accumulator scratch
                + 2 * 2 * Cp * 4)         # stats tile

    tho = max(1, min(Ho, _cdiv(512, Wop)))
    while tho > 1 and vmem1_bytes(tho) > _VMEM_BUDGET:
        tho = max(1, tho // 2)
    n_rb = _cdiv(Ho, tho)
    ho_pad = n_rb * tho
    M = tho * Wop

    # ---- glue (single pass over x): NHWC, reflect pad, row/column-parity tap
    #      slabs concatenated along channels, rows pre-flattened.  Total extra
    #      HBM input is ~1.5x the image in bf16 (no 9x im2col matrix). ----
    xh = jnp.transpose(x, (0, 2, 3, 1))                            # N,H,W,C
    xp = jnp.pad(xh, ((0, 0), (1, 1), (1, 1), (0, 0)), mode="reflect")

    def col_taps(a):                       # a: (N, R, W+2, C), one row parity
        ev = a[:, :, 0::2, :]
        od = a[:, :, 1::2, :]
        t = jnp.concatenate(               # [kw=0 ; kw=1 ; kw=2] channel groups
            [ev[:, :, :Wo, :], od[:, :, :Wo, :], ev[:, :, 1:Wo + 1, :]],
            axis=-1)
        return jnp.pad(t, ((0, 0), (0, 0), (0, Wop - Wo), (0, 0)))

    e_t = col_taps(xp[:, 0::2])[:, :Ho + 1]                        # even rows
    o_t = col_taps(xp[:, 1::2])[:, :Ho]                            # odd rows
    e_t = jnp.pad(e_t, ((0, 0), (0, ho_pad - Ho), (0, 0), (0, 0)))
    o_t = jnp.pad(o_t, ((0, 0), (0, ho_pad - Ho), (0, 0), (0, 0)))
    e_flat = e_t.reshape(N, (ho_pad + 1) * Wop, C3).astype(jnp.bfloat16)
    o_flat = o_t.reshape(N, ho_pad * Wop, C3).astype(jnp.bfloat16)

    # torch weight (Cout, Cin, kh, kw) -> (kh, kw*Cin, Cp) bf16, Cout padded
    w_g = jnp.transpose(w, (2, 3, 1, 0)).reshape(3, C3, C)
    w_g = jnp.pad(w_g, ((0, 0), (0, 0), (0, Cp - C))).astype(jnp.bfloat16)

    # ---- kernel 1: strided conv + per-tile partial statistics ----
    y_flat, stats = pl.pallas_call(
        functools.partial(conv_stats_kernel, tho=tho, wop=Wop, ho_valid=Ho),
        out_shape=(
            jax.ShapeDtypeStruct((N, ho_pad * Wop, Cp), jnp.bfloat16),
            jax.ShapeDtypeStruct((N, n_rb, 2, Cp), jnp.float32),
        ),
        grid=(N, n_rb),
        in_specs=[
            pl.BlockSpec((1, M, C3), lambda n, r: (n, r, 0)),
            pl.BlockSpec((1, Wop, C3), lambda n, r: (n, (r + 1) * tho, 0)),
            pl.BlockSpec((1, M, C3), lambda n, r: (n, r, 0)),
            # TODO(synk): on v7x, single-buffer this constant operand
            # (pipeline_mode=pl.Buffered(1)) to reclaim VMEM for very large C.
            pl.BlockSpec((3, C3, Cp), lambda n, r: (0, 0, 0)),
        ],
        out_specs=(
            pl.BlockSpec((1, M, Cp), lambda n, r: (n, r, 0)),
            pl.BlockSpec((1, 1, 2, Cp), lambda n, r: (n, r, 0, 0)),
        ),
        scratch_shapes=[pltpu.VMEM((M, Cp), jnp.float32)],
        compiler_params=pltpu.CompilerParams(
            dimension_semantics=("parallel", "parallel"),
            vmem_limit_bytes=_VMEM_LIMIT),
    )(e_flat, e_flat, o_flat, w_g)

    # ---- tiny host-side (JAX) reduction: BN scale/shift hoisted out ----
    st = stats.sum(axis=(0, 1))                     # (2, Cp)
    cnt = jnp.float32(N * Ho * Wo)
    mean = st[0] / cnt
    # TODO(synk): E[x^2]-E[x]^2 can cancel for very large N*Ho*Wo; use a
    # shifted / two-pass variance for production sizes.
    var = jnp.maximum(st[1] / cnt - mean * mean, 0.0)
    inv = jax.lax.rsqrt(var + eps)
    gamma_p = jnp.pad(gamma.astype(jnp.float32), (0, Cp - C))
    beta_p = jnp.pad(beta.astype(jnp.float32), (0, Cp - C))
    scale = (gamma_p * inv).reshape(1, Cp)
    shift = (beta_p - mean * gamma_p * inv).reshape(1, Cp)

    # ---- kernel 2: fused BN-apply + LeakyReLU (pure HBM bandwidth) ----
    y2d = y_flat.reshape(N * ho_pad * Wop, Cp)      # free reshape (leading dims)
    m2 = y2d.shape[0]
    steps = N * n_rb                                # m2 == steps * M
    row_budget = max(M, (_VMEM_BUDGET // 2) // (Cp * 12))
    j = min(steps, max(1, min(2048, row_budget) // M))
    while steps % j:
        j -= 1
    tm2 = j * M                                     # divides m2 -> no padding copy

    out2d = pl.pallas_call(
        functools.partial(bn_leaky_kernel, slope=slope),
        out_shape=jax.ShapeDtypeStruct((m2, Cp), jnp.float32),
        grid=(m2 // tm2,),
        in_specs=[
            pl.BlockSpec((tm2, Cp), lambda i: (i, 0)),
            pl.BlockSpec((1, Cp), lambda i: (0, 0)),
            pl.BlockSpec((1, Cp), lambda i: (0, 0)),
        ],
        out_specs=pl.BlockSpec((tm2, Cp), lambda i: (i, 0)),
        compiler_params=pltpu.CompilerParams(
            dimension_semantics=("parallel",),
            vmem_limit_bytes=_VMEM_LIMIT),
    )(y2d, scale, shift)

    out = out2d.reshape(N, ho_pad, Wop, Cp)[:, :Ho, :Wo, :C]
    # TODO(synk): keep NHWC (and/or bf16) if the consumer accepts it; this
    # slice + transpose only restores the PyTorch module's NCHW f32 layout.
    return jnp.transpose(out, (0, 3, 1, 2))


def reference(x, w, b, gamma, beta, eps=1e-5, slope=0.01):
    """Plain-JAX f32 reference matching PyTorch DownSample (training-mode BN)."""
    xp = jnp.pad(x, ((0, 0), (0, 0), (1, 1), (1, 1)), mode="reflect")
    y = jax.lax.conv_general_dilated(
        xp, w, window_strides=(2, 2), padding="VALID",
        dimension_numbers=("NCHW", "OIHW", "NCHW"))
    y = y + b[None, :, None, None]
    mean = y.mean(axis=(0, 2, 3))
    var = ((y - mean[None, :, None, None]) ** 2).mean(axis=(0, 2, 3))
    z = (y - mean[None, :, None, None]) * jax.lax.rsqrt(var + eps)[None, :, None, None]
    z = z * gamma[None, :, None, None] + beta[None, :, None, None]
    return jnp.where(z >= 0, z, slope * z)


if __name__ == "__main__":
    key = jax.random.PRNGKey(0)
    k1, k2, k3, k4, k5 = jax.random.split(key, 5)

    N, C, H, W = 2, 4, 16, 16
    x = jax.random.normal(k1, (N, C, H, W), dtype=jnp.float32)
    w = jax.random.normal(k2, (C, C, 3, 3), dtype=jnp.float32) * 0.2
    b = jax.random.normal(k3, (C,), dtype=jnp.float32) * 0.1
    gamma = 1.0 + 0.1 * jax.random.normal(k4, (C,), dtype=jnp.float32)
    beta = 0.1 * jax.random.normal(k5, (C,), dtype=jnp.float32)

    out = jax.block_until_ready(downsample_forward(x, w, b, gamma, beta))
    ref = reference(x, w, b, gamma, beta)

    assert out.shape == (N, C, H // 2, W // 2), out.shape
    err = float(jnp.max(jnp.abs(out - ref)))
    # bf16 MXU operands + bf16 conv intermediate -> compare at bf16-level tol
    assert err < 7.5e-2, err

    print("KERNEL_OK")
</pallas_src>

<mosaic_0001>
module attributes {stable_mosaic.version = 11 : i64} {
  func.func @conv_stats_kernel(%arg0: i32, %arg1: i32, %arg2: memref<1x64x12xbf16, #tpu.memory_space<vmem>>, %arg3: memref<1x8x12xbf16, #tpu.memory_space<vmem>>, %arg4: memref<1x64x12xbf16, #tpu.memory_space<vmem>>, %arg5: memref<3x12x128xbf16, #tpu.memory_space<vmem>>, %arg6: memref<1x64x128xbf16, #tpu.memory_space<vmem>>, %arg7: memref<1x1x2x128xf32, #tpu.memory_space<vmem>>, %arg8: memref<64x128xf32, #tpu.memory_space<vmem>>) attributes {dimension_semantics = [#tpu.dimension_semantics<parallel>, #tpu.dimension_semantics<parallel>], iteration_bounds = array<i64: 2, 1>, scalar_prefetch = 0 : i64, scratch_operands = 1 : i64, tpu.core_type = #tpu.core_type<tc>, window_params = [{transform_indices = @transform_0, window_bounds = array<i64: 1, 64, 12>}, {transform_indices = @transform_1, window_bounds = array<i64: 1, 8, 12>}, {transform_indices = @transform_2, window_bounds = array<i64: 1, 64, 12>}, {pipeline_mode = #tpu.pipeline_mode<synchronous>, transform_indices = @transform_3, window_bounds = array<i64: 3, 12, 128>}, {transform_indices = @transform_4, window_bounds = array<i64: 1, 64, 128>}, {transform_indices = @transform_5, window_bounds = array<i64: 1, 1, 2, 128>}]} {
    %c0 = arith.constant 0 : index
    %c0_0 = arith.constant 0 : index
    %c0_1 = arith.constant 0 : index
    %0 = vector.load %arg2[%c0, %c0_0, %c0_1] : memref<1x64x12xbf16, #tpu.memory_space<vmem>>, vector<1x64x12xbf16>
    %1 = vector.shape_cast %0 : vector<1x64x12xbf16> to vector<64x12xbf16>
    %c0_2 = arith.constant 0 : index
    %c0_3 = arith.constant 0 : index
    %c0_4 = arith.constant 0 : index
    %2 = vector.load %arg5[%c0_2, %c0_3, %c0_4] : memref<3x12x128xbf16, #tpu.memory_space<vmem>>, vector<1x12x128xbf16>
    %3 = vector.shape_cast %2 : vector<1x12x128xbf16> to vector<12x128xbf16>
    %cst = arith.constant dense<0.000000e+00> : vector<64x128xf32>
    %4 = tpu.matmul %1, %3, %cst {dimension_numbers = #tpu.dot_dimension_numbers<[1], [0], [0], [1], [0, 0, 1, 1], [], []>} : vector<64x12xbf16>, vector<12x128xbf16>, vector<64x128xf32> -> vector<64x128xf32>
    %c0_5 = arith.constant 0 : index
    %c0_6 = arith.constant 0 : index
    %5 = vector.load %arg8[%c0_5, %c0_6] : memref<64x128xf32, #tpu.memory_space<vmem>>, vector<64x128xf32>
    tpu.vector_store %arg8[%c0_5, %c0_6], %4 {strides = array<i32>} : memref<64x128xf32, #tpu.memory_space<vmem>>, vector<64x128xf32>,
    %c0_7 = arith.constant 0 : index
    %c0_8 = arith.constant 0 : index
    %6 = vector.load %arg8[%c0_7, %c0_8] : memref<64x128xf32, #tpu.memory_space<vmem>>, vector<64x128xf32>
    %c0_9 = arith.constant 0 : index
    %c0_10 = arith.constant 0 : index
    %c0_11 = arith.constant 0 : index
    %7 = vector.load %arg4[%c0_9, %c0_10, %c0_11] : memref<1x64x12xbf16, #tpu.memory_space<vmem>>, vector<1x64x12xbf16>
    %8 = vector.shape_cast %7 : vector<1x64x12xbf16> to vector<64x12xbf16>
    %c1 = arith.constant 1 : index
    %c0_12 = arith.constant 0 : index
    %c0_13 = arith.constant 0 : index
    %9 = vector.load %arg5[%c1, %c0_12, %c0_13] : memref<3x12x128xbf16, #tpu.memory_space<vmem>>, vector<1x12x128xbf16>
    %10 = vector.shape_cast %9 : vector<1x12x128xbf16> to vector<12x128xbf16>
    %cst_14 = arith.constant dense<0.000000e+00> : vector<64x128xf32>
    %11 = tpu.matmul %8, %10, %cst_14 {dimension_numbers = #tpu.dot_dimension_numbers<[1], [0], [0], [1], [0, 0, 1, 1], [], []>} : vector<64x12xbf16>, vector<12x128xbf16>, vector<64x128xf32> -> vector<64x128xf32>
    %12 = arith.addf %6, %11 : vector<64x128xf32>
    %c0_15 = arith.constant 0 : index
    %c0_16 = arith.constant 0 : index
    %13 = vector.load %arg8[%c0_15, %c0_16] : memref<64x128xf32, #tpu.memory_space<vmem>>, vector<64x128xf32>
    tpu.vector_store %arg8[%c0_15, %c0_16], %12 {strides = array<i32>} : memref<64x128xf32, #tpu.memory_space<vmem>>, vector<64x128xf32>,
    %c0_17 = arith.constant 0 : index
    %c0_18 = arith.constant 0 : index
    %14 = vector.load %arg8[%c0_17, %c0_18] : memref<64x128xf32, #tpu.memory_space<vmem>>, vector<56x128xf32>
    %c0_19 = arith.constant 0 : index
    %c8 = arith.constant 8 : index
    %c0_20 = arith.constant 0 : index
    %15 = vector.load %arg2[%c0_19, %c8, %c0_20] : memref<1x64x12xbf16, #tpu.memory_space<vmem>>, vector<1x56x12xbf16>
    %16 = vector.shape_cast %15 : vector<1x56x12xbf16> to vector<56x12xbf16>
    %c2 = arith.constant 2 : index
    %c0_21 = arith.constant 0 : index
    %c0_22 = arith.constant 0 : index
    %17 = vector.load %arg5[%c2, %c0_21, %c0_22] : memref<3x12x128xbf16, #tpu.memory_space<vmem>>, vector<1x12x128xbf16>
    %18 = vector.shape_cast %17 : vector<1x12x128xbf16> to vector<12x128xbf16>
    %cst_23 = arith.constant dense<0.000000e+00> : vector<56x128xf32>
    %19 = tpu.matmul %16, %18, %cst_23 {dimension_numbers = #tpu.dot_dimension_numbers<[1], [0], [0], [1], [0, 0, 1, 1], [], []>} : vector<56x12xbf16>, vector<12x128xbf16>, vector<56x128xf32> -> vector<56x128xf32>
    %20 = arith.addf %14, %19 : vector<56x128xf32>
    %c0_24 = arith.constant 0 : index
    %c0_25 = arith.constant 0 : index
    %21 = vector.load %arg8[%c0_24, %c0_25] : memref<64x128xf32, #tpu.memory_space<vmem>>, vector<56x128xf32>
    tpu.vector_store %arg8[%c0_24, %c0_25], %20 {strides = array<i32>} : memref<64x128xf32, #tpu.memory_space<vmem>>, vector<56x128xf32>,
    %c56 = arith.constant 56 : index
    %c0_26 = arith.constant 0 : index
    %22 = vector.load %arg8[%c56, %c0_26] : memref<64x128xf32, #tpu.memory_space<vmem>>, vector<8x128xf32>
    %c0_27 = arith.constant 0 : index
    %c0_28 = arith.constant 0 : index
    %c0_29 = arith.constant 0 : index
    %23 = vector.load %arg3[%c0_27, %c0_28, %c0_29] : memref<1x8x12xbf16, #tpu.memory_space<vmem>>, vector<1x8x12xbf16>
    %24 = vector.shape_cast %23 : vector<1x8x12xbf16> to vector<8x12xbf16>
    %c2_30 = arith.constant 2 : index
    %c0_31 = arith.constant 0 : index
    %c0_32 = arith.constant 0 : index
    %25 = vector.load %arg5[%c2_30, %c0_31, %c0_32] : memref<3x12x128xbf16, #tpu.memory_space<vmem>>, vector<1x12x128xbf16>
    %26 = vector.shape_cast %25 : vector<1x12x128xbf16> to vector<12x128xbf16>
    %cst_33 = arith.constant dense<0.000000e+00> : vector<8x128xf32>
    %27 = tpu.matmul %24, %26, %cst_33 {dimension_numbers = #tpu.dot_dimension_numbers<[1], [0], [0], [1], [0, 0, 1, 1], [], []>} : vector<8x12xbf16>, vector<12x128xbf16>, vector<8x128xf32> -> vector<8x128xf32>
    %28 = arith.addf %22, %27 : vector<8x128xf32>
    %c56_34 = arith.constant 56 : index
    %c0_35 = arith.constant 0 : index
    %29 = vector.load %arg8[%c56_34, %c0_35] : memref<64x128xf32, #tpu.memory_space<vmem>>, vector<8x128xf32>
    tpu.vector_store %arg8[%c56_34, %c0_35], %28 {strides = array<i32>} : memref<64x128xf32, #tpu.memory_space<vmem>>, vector<8x128xf32>,
    %c0_36 = arith.constant 0 : index
    %c0_37 = arith.constant 0 : index
    %30 = vector.load %arg8[%c0_36, %c0_37] : memref<64x128xf32, #tpu.memory_space<vmem>>, vector<64x128xf32>
    %31 = arith.truncf %30 : vector<64x128xf32> to vector<64x128xbf16>
    %c0_38 = arith.constant 0 : index
    %c0_39 = arith.constant 0 : index
    %c0_40 = arith.constant 0 : index
    %32 = vector.load %arg6[%c0_38, %c0_39, %c0_40] : memref<1x64x128xbf16, #tpu.memory_space<vmem>>, vector<1x64x128xbf16>
    %33 = vector.shape_cast %32 : vector<1x64x128xbf16> to vector<64x128xbf16>
    %34 = vector.shape_cast %31 : vector<64x128xbf16> to vector<1x64x128xbf16>
    tpu.vector_store %arg6[%c0_38, %c0_39, %c0_40], %34 {strides = array<i32>} : memref<1x64x128xbf16, #tpu.memory_space<vmem>>, vector<1x64x128xbf16>,
    %cst_41 = arith.constant dense<0.000000e+00> : vector<128xf32>
    %35 = vector.multi_reduction <add>, %30, %cst_41 [0] : vector<64x128xf32> to vector<128xf32>
    %36 = vector.shape_cast %35 : vector<128xf32> to vector<1x128xf32>
    %c0_42 = arith.constant 0 : index
    %c0_43 = arith.constant 0 : index
    %c0_44 = arith.constant 0 : index
    %c0_45 = arith.constant 0 : index
    %37 = vector.load %arg7[%c0_42, %c0_43, %c0_44, %c0_45] : memref<1x1x2x128xf32, #tpu.memory_space<vmem>>, vector<1x1x1x128xf32>
    %38 = vector.shape_cast %37 : vector<1x1x1x128xf32> to vector<1x128xf32>
    %39 = vector.shape_cast %36 : vector<1x128xf32> to vector<1x1x1x128xf32>
    tpu.vector_store %arg7[%c0_42, %c0_43, %c0_44, %c0_45], %39 {strides = array<i32>} : memref<1x1x2x128xf32, #tpu.memory_space<vmem>>, vector<1x1x1x128xf32>,
    %40 = arith.mulf %30, %30 : vector<64x128xf32>
    %cst_46 = arith.constant dense<0.000000e+00> : vector<128xf32>
    %41 = vector.multi_reduction <add>, %40, %cst_46 [0] : vector<64x128xf32> to vector<128xf32>
    %42 = vector.shape_cast %41 : vector<128xf32> to vector<1x128xf32>
    %c0_47 = arith.constant 0 : index
    %c0_48 = arith.constant 0 : index
    %c1_49 = arith.constant 1 : index
    %c0_50 = arith.constant 0 : index
    %43 = vector.load %arg7[%c0_47, %c0_48, %c1_49, %c0_50] : memref<1x1x2x128xf32, #tpu.memory_space<vmem>>, vector<1x1x1x128xf32>
    %44 = vector.shape_cast %43 : vector<1x1x1x128xf32> to vector<1x128xf32>
    %45 = vector.shape_cast %42 : vector<1x128xf32> to vector<1x1x1x128xf32>
    tpu.vector_store %arg7[%c0_47, %c0_48, %c1_49, %c0_50], %45 {strides = array<i32>} : memref<1x1x2x128xf32, #tpu.memory_space<vmem>>, vector<1x1x1x128xf32>,
    return
  }
  func.func @transform_0(%arg0: i32, %arg1: i32) -> (i32, i32, i32) {
    %c0_i32 = arith.constant 0 : i32
    %c0_i32_0 = arith.constant 0 : i32
    return %arg0, %arg1, %c0_i32 : i32, i32, i32
  }
  func.func @transform_1(%arg0: i32, %arg1: i32) -> (i32, i32, i32) {
    %c1_i32 = arith.constant 1 : i32
    %0 = arith.addi %arg1, %c1_i32 : i32
    %c8_i32 = arith.constant 8 : i32
    %1 = arith.muli %0, %c8_i32 : i32
    %c0_i32 = arith.constant 0 : i32
    %c0_i32_0 = arith.constant 0 : i32
    return %arg0, %1, %c0_i32 : i32, i32, i32
  }
  func.func @transform_2(%arg0: i32, %arg1: i32) -> (i32, i32, i32) {
    %c0_i32 = arith.constant 0 : i32
    %c0_i32_0 = arith.constant 0 : i32
    return %arg0, %arg1, %c0_i32 : i32, i32, i32
  }
  func.func @transform_3(%arg0: i32, %arg1: i32) -> (i32, i32, i32) {
    %c0_i32 = arith.constant 0 : i32
    %c0_i32_0 = arith.constant 0 : i32
    %c0_i32_1 = arith.constant 0 : i32
    %c0_i32_2 = arith.constant 0 : i32
    return %c0_i32, %c0_i32_0, %c0_i32_1 : i32, i32, i32
  }
  func.func @transform_4(%arg0: i32, %arg1: i32) -> (i32, i32, i32) {
    %c0_i32 = arith.constant 0 : i32
    %c0_i32_0 = arith.constant 0 : i32
    return %arg0, %arg1, %c0_i32 : i32, i32, i32
  }
  func.func @transform_5(%arg0: i32, %arg1: i32) -> (i32, i32, i32, i32) {
    %c0_i32 = arith.constant 0 : i32
    %c0_i32_0 = arith.constant 0 : i32
    %c0_i32_1 = arith.constant 0 : i32
    return %arg0, %arg1, %c0_i32, %c0_i32_0 : i32, i32, i32, i32
  }
}

</mosaic_0001>

<llo_original>
// kernel: tpu_custom_call.1
$region0: #{tpu_custom_call.1}
  #allocation0 [shape = 'u32[]', space=smem, size = 0x4, offset = 0x4, fixed_abs, tag = 'smem constant byte address 0x4 - core index']
  #allocation1 [shape = 'u32[72,128]{1,0:T(1,128)}', space=vmem, size = 0x9000, scoped, tag = 'internal scratch']
  #allocation2 [shape = 'f32[64,128]{1,0:T(8,128)}', space=vmem, size = 0x8000, scoped, tag = 'scratch operand']
  %s0 = inlined_call_operand.vmem [shape: bf16[2,72,12], index: 0, kind: input, shape index: {}]
  %s1 = inlined_call_operand.vmem [shape: bf16[2,72,12], index: 1, kind: input, shape index: {}]
  %s2 = inlined_call_operand.vmem [shape: bf16[2,64,12], index: 2, kind: input, shape index: {}]
  %s3 = inlined_call_operand.vmem [shape: bf16[3,12,128], index: 3, kind: input, shape index: {}]
  %s4 = inlined_call_operand.hbm [shape: bf16[2,64,128], index: 4, kind: output, shape index: {0}]
  %s5 = inlined_call_operand.hbm [shape: f32[2,1,2,128], index: 5, kind: output, shape index: {1}]
  %6 = xla_tuple %s4, %s5
  %s7 = sld [smem:[#allocation0]]
  $region57: #{tpu_custom_call.1} parent=0
    _
  %s9 = ssub.s32 1, %s7
  %s10 = scalar_select 0, %s9, %s7
  $region1: #{tpu_custom_call.1} parent=0
    #allocation3 [shape = 'u8[32768]{0}', space=vmem, size = 0x8000, scoped, tag = 'output window, operand 0']
    #allocation4 [shape = 's32[2]{0}', space=sflag, size = 0x8, scoped, tag = 'scoped memory for tpu_custom_call.1']
    #allocation5 [shape = 'u8[2048]{0}', space=vmem, size = 0x800, scoped, tag = 'output window, operand 1']
    #allocation6 [shape = 's32[2]{0}', space=sflag, size = 0x8, scoped, tag = 'scoped memory for tpu_custom_call.1']
    %11 = vsyncpa [#allocation4], 0
    %s12 = scalar_lea.sflag [#allocation4], 1
    %13 = vsyncpa %s12, 0
    %14 = vsyncpa [#allocation6], 0
    %s15 = scalar_lea.sflag [#allocation6], 1
    %16 = vsyncpa %s15, 0
    loop: start=0, step=1, limit=4
    $region2: #{tpu_custom_call.1} parent=1 // loop_pre_header
      _
    $region3: #{tpu_custom_call.1} parent=1 // loop_header
      %s18 = sphi 0, %s22
      %p19 = scmp.ge.s32.totalorder %s18, 4
      %s25 = sphi 0, %s37
      %s26 = sphi 0, %s33
      %s27 = sphi 0, %s25
      %s28 = sphi 0, %s26
      %s29 = sphi 0, %s27
      %s30 = sphi 0, %s28
      %s42 = sphi 0, %s44
      %s45 = sphi 0, %s42
      %s46 = sphi 0, %s45
      %s62 = sphi 0, %s46
      %s74 = sphi 0, %s76
      %s77 = sphi 0, %s74
      %s78 = sphi 0, %s77
      %s94 = sphi 0, %s78
      %s102 = sphi 0, %s104
      %s105 = sphi 0, %s102
      %s106 = sphi 0, %s105
      %s122 = sphi 0, %s106
      %s126 = sphi 0, %s126
      %s128 = sphi 0, %s126
      %s129 = sphi 0, %s128
      %s143 = sphi 0, %s129
      %s151 = sphi 0, %s153
      %s154 = sphi 0, %s151
      %s155 = sphi 0, %s154
      %s171 = sphi 0, %s155
      %s179 = sphi 0, %s181
      %s182 = sphi 0, %s179
      %s183 = sphi 0, %s182
      %s199 = sphi 0, %s183
    $region4: #{tpu_custom_call.1} parent=1 // loop_header_branch
      %21 = sbr.rel (%p19) target = $region8
    $region5: #{tpu_custom_call.1} parent=1 // loop_body
      %s23 = ssub.s32 %s18, 1
      %s24 = ssub.s32 %s18, 2
      %s31 = sadd.s32 1, %s26
      %p32 = scmp.ge.s32.totalorder %s31, 1
      %s33 = scalar_select %p32, 0, %s31
      %s34 = sadd.s32 1, %s25
      %s35 = scalar_select %p32, %s34, %s25
      %p36 = scmp.ge.s32.totalorder %s35, 2
      %s37 = scalar_select %p36, 0, %s35
      %s38 = ssub.s32 %s25, %s37
      %s39 = ssub.s32 %s26, %s33
      %s40 = sor.u32 %s38, %s39
      %p41 = scmp.eq.s32.totalorder %s40, 0
      %s43 = sadd.s32 %s42, 1
      %s44 = scalar_select %p41, %s42, %s43
      %p47 = pneg %p41
      %p48 = scmp.eq.s32.totalorder %s18, 1
      %p49 = por %p47, %p48
      %p50 = scmp.ne.s32.totalorder %s42, %s45
      %p51 = scmp.eq.s32.totalorder %s18, 0
      %p52 = por %p50, %p51
      %p53 = scmp.ne.s32.totalorder %s42, %s45
      %p54 = scmp.eq.s32.totalorder %s23, 1
      %p55 = por %p53, %p54
      %p56 = scmp.ne.s32.totalorder %s45, %s46
      %p57 = scmp.eq.s32.totalorder %s23, 0
      %p58 = por %p56, %p57
      %p59 = scmp.ne.s32.totalorder %s45, %s46
      %p60 = scmp.eq.s32.totalorder %s24, 1
      %p61 = por %p59, %p60
      %p63 = scmp.ne.s32.totalorder %s46, %s62
      %p64 = scmp.eq.s32.totalorder %s24, 0
      %p65 = por %p63, %p64
      %s66 = sadd.s32 %s26, 1
      %s67 = smul.u32 %s66, 8
      %s68 = sadd.s32 %s33, 1
      %s69 = smul.u32 %s68, 8
      %s70 = ssub.s32 %s25, %s37
      %s71 = ssub.s32 %s67, %s69
      %s72 = sor.u32 %s70, %s71
      %p73 = scmp.eq.s32.totalorder %s72, 0
      %s75 = sadd.s32 %s74, 1
      %s76 = scalar_select %p73, %s74, %s75
      %p79 = pneg %p73
      %p80 = scmp.eq.s32.totalorder %s18, 1
      %p81 = por %p79, %p80
      %p82 = scmp.ne.s32.totalorder %s74, %s77
      %p83 = scmp.eq.s32.totalorder %s18, 0
      %p84 = por %p82, %p83
      %p85 = scmp.ne.s32.totalorder %s74, %s77
      %p86 = scmp.eq.s32.totalorder %s23, 1
      %p87 = por %p85, %p86
      %p88 = scmp.ne.s32.totalorder %s77, %s78
      %p89 = scmp.eq.s32.totalorder %s23, 0
      %p90 = por %p88, %p89
      %p91 = scmp.ne.s32.totalorder %s77, %s78
      %p92 = scmp.eq.s32.totalorder %s24, 1
      %p93 = por %p91, %p92
      %p95 = scmp.ne.s32.totalorder %s78, %s94
      %p96 = scmp.eq.s32.totalorder %s24, 0
      %p97 = por %p95, %p96
      %s98 = ssub.s32 %s25, %s37
      %s99 = ssub.s32 %s26, %s33
      %s100 = sor.u32 %s98, %s99
      %p101 = scmp.eq.s32.totalorder %s100, 0
      %s103 = sadd.s32 %s102, 1
      %s104 = scalar_select %p101, %s102, %s103
      %p107 = pneg %p101
      %p108 = scmp.eq.s32.totalorder %s18, 1
      %p109 = por %p107, %p108
      %p110 = scmp.ne.s32.totalorder %s102, %s105
      %p111 = scmp.eq.s32.totalorder %s18, 0
      %p112 = por %p110, %p111
      %p113 = scmp.ne.s32.totalorder %s102, %s105
      %p114 = scmp.eq.s32.totalorder %s23, 1
      %p115 = por %p113, %p114
      %p116 = scmp.ne.s32.totalorder %s105, %s106
      %p117 = scmp.eq.s32.totalorder %s23, 0
      %p118 = por %p116, %p117
      %p119 = scmp.ne.s32.totalorder %s105, %s106
      %p120 = scmp.eq.s32.totalorder %s24, 1
      %p121 = por %p119, %p120
      %p123 = scmp.ne.s32.totalorder %s106, %s122
      %p124 = scmp.eq.s32.totalorder %s24, 0
      %p125 = por %p123, %p124
      %s127 = sadd.s32 %s126, 1
      %p130 = scmp.eq.s32.totalorder %s18, 1
      %p131 = scmp.ne.s32.totalorder %s126, %s128
      %p132 = scmp.eq.s32.totalorder %s18, 0
      %p133 = por %p131, %p132
      %p134 = scmp.ne.s32.totalorder %s126, %s128
      %p135 = scmp.eq.s32.totalorder %s23, 1
      %p136 = por %p134, %p135
      %p137 = scmp.ne.s32.totalorder %s128, %s129
      %p138 = scmp.eq.s32.totalorder %s23, 0
      %p139 = por %p137, %p138
      %p140 = scmp.ne.s32.totalorder %s128, %s129
      %p141 = scmp.eq.s32.totalorder %s24, 1
      %p142 = por %p140, %p141
      %p144 = scmp.ne.s32.totalorder %s129, %s143
      %p145 = scmp.eq.s32.totalorder %s24, 0
      %p146 = por %p144, %p145
      %s147 = ssub.s32 %s25, %s37
      %s148 = ssub.s32 %s26, %s33
      %s149 = sor.u32 %s147, %s148
      %p150 = scmp.eq.s32.totalorder %s149, 0
      %s152 = sadd.s32 %s151, 1
      %s153 = scalar_select %p150, %s151, %s152
      %p156 = pneg %p150
      %p157 = scmp.eq.s32.totalorder %s18, 1
      %p158 = por %p156, %p157
      %p159 = scmp.ne.s32.totalorder %s151, %s154
      %p160 = scmp.eq.s32.totalorder %s18, 0
      %p161 = por %p159, %p160
      %p162 = scmp.ne.s32.totalorder %s151, %s154
      %p163 = scmp.eq.s32.totalorder %s23, 1
      %p164 = por %p162, %p163
      %p165 = scmp.ne.s32.totalorder %s154, %s155
      %p166 = scmp.eq.s32.totalorder %s23, 0
      %p167 = por %p165, %p166
      %p168 = scmp.ne.s32.totalorder %s154, %s155
      %p169 = scmp.eq.s32.totalorder %s24, 1
      %p170 = por %p168, %p169
      %p172 = scmp.ne.s32.totalorder %s155, %s171
      %p173 = scmp.eq.s32.totalorder %s24, 0
      %p174 = por %p172, %p173
      %s175 = ssub.s32 %s25, %s37
      %s176 = ssub.s32 %s26, %s33
      %s177 = sor.u32 %s175, %s176
      %p178 = scmp.eq.s32.totalorder %s177, 0
      %s180 = sadd.s32 %s179, 1
      %s181 = scalar_select %p178, %s179, %s180
      %p184 = pneg %p178
      %p185 = scmp.eq.s32.totalorder %s18, 1
      %p186 = por %p184, %p185
      %p187 = scmp.ne.s32.totalorder %s179, %s182
      %p188 = scmp.eq.s32.totalorder %s18, 0
      %p189 = por %p187, %p188
      %p190 = scmp.ne.s32.totalorder %s179, %s182
      %p191 = scmp.eq.s32.totalorder %s23, 1
      %p192 = por %p190, %p191
      %p193 = scmp.ne.s32.totalorder %s182, %s183
      %p194 = scmp.eq.s32.totalorder %s23, 0
      %p195 = por %p193, %p194
      %p196 = scmp.ne.s32.totalorder %s182, %s183
      %p197 = scmp.eq.s32.totalorder %s24, 1
      %p198 = por %p196, %p197
      %p200 = scmp.ne.s32.totalorder %s183, %s199
      %p201 = scmp.eq.s32.totalorder %s24, 0
      %p202 = por %p200, %p201
      %p203 = scmp.le.s32.totalorder 1, %s18
      %p204 = scmp.lt.s32.totalorder %s18, 3
      %p205 = pnand %p203, %p204
      %p206 = pneg %p205
      // Predicated region
      $region9: #{tpu_custom_call.1} parent=5 // pred_check
        _
      $region10: #{tpu_custom_call.1} parent=5 // pred_check_branch
        %208 = sbr.rel (%p205) target = $region12
      $region11: #{tpu_custom_call.1} parent=5 // pred_region
        %s209 = ssub.s32 %s18, 1
        // Predicated region
        $region13: #{tpu_custom_call.1} parent=11 // pred_check
          %p210 = pneg %p139
        $region14: #{tpu_custom_call.1} parent=11 // pred_check_branch
          %212 = sbr.rel (%p210) target = $region16
        $region15: #{tpu_custom_call.1} parent=11 // pred_region
          _
        $region16: #{tpu_custom_call.1} parent=11 // pred_fallthru
          _
      $region12: #{tpu_custom_call.1} parent=5 // pred_fallthru
        _
      %p213 = scmp.lt.s32.totalorder %s18, 2
      // Predicated region
      $region17: #{tpu_custom_call.1} parent=5 // pred_check
        %p214 = pneg %p213
      $region18: #{tpu_custom_call.1} parent=5 // pred_check_branch
        %216 = sbr.rel (%p214) target = $region20
      $region19: #{tpu_custom_call.1} parent=5 // pred_region
        // Predicated region
        $region21: #{tpu_custom_call.1} parent=19 // pred_check
          %p217 = pneg %p52
        $region22: #{tpu_custom_call.1} parent=19 // pred_check_branch
          %219 = sbr.rel (%p217) target = $region24
        $region23: #{tpu_custom_call.1} parent=19 // pred_region
          %s220 = smul.u32 8, %s26
          %s221 = ssub.s32 9, %s220
          %p222 = scmp.lt.s32.totalorder %s221, 8
          %s223 = scalar_select %p222, %s221, 8
          %s224 = smul.u32 4, %s223
          %p225 = scmp.lt.s32.totalorder %s25, 1
          %s226 = scalar_select %p225, %s25, 1
          %p227 = scmp.lt.s32.totalorder %s220, 8
          %s228 = scalar_select %p227, %s220, 8
          %s229 = smul.addr %s226, 9
          %s230 = sadd.s32 %s228, %s229
          %s231 = smul.addr %s230, 4
          %s232 = scalar_lea.vmem %s0, %s231
          %s233 = smul.u32 8, %s26
          %s234 = ssub.s32 9, %s233
          %p235 = scmp.lt.s32.totalorder %s234, 8
          %s236 = scalar_select %p235, %s234, 8
          %s237 = smul.u32 4, %s236
        $region24: #{tpu_custom_call.1} parent=19 // pred_fallthru
          _
        // Predicated region
        $region25: #{tpu_custom_call.1} parent=19 // pred_check
          %p238 = pneg %p84
        $region26: #{tpu_custom_call.1} parent=19 // pred_check_branch
          %240 = sbr.rel (%p238) target = $region28
        $region27: #{tpu_custom_call.1} parent=19 // pred_region
          %s241 = sadd.s32 %s26, 1
          %s242 = smul.u32 %s241, 8
          %p243 = scmp.lt.s32.totalorder %s25, 1
          %s244 = scalar_select %p243, %s25, 1
          %p245 = scmp.lt.s32.totalorder %s242, 8
          %s246 = scalar_select %p245, %s242, 8
          %s247 = smul.addr %s244, 9
          %s248 = sadd.s32 %s246, %s247
          %s249 = smul.addr %s248, 4
          %s250 = scalar_lea.vmem %s1, %s249
          %s251 = sadd.s32 %s26, 1
          %s252 = smul.u32 %s251, 8
        $region28: #{tpu_custom_call.1} parent=19 // pred_fallthru
          _
        // Predicated region
        $region29: #{tpu_custom_call.1} parent=19 // pred_check
          %p253 = pneg %p112
        $region30: #{tpu_custom_call.1} parent=19 // pred_check_branch
          %255 = sbr.rel (%p253) target = $region32
        $region31: #{tpu_custom_call.1} parent=19 // pred_region
          %s256 = smul.u32 8, %s26
          %p257 = scmp.lt.s32.totalorder %s25, 1
          %s258 = scalar_select %p257, %s25, 1
          %p259 = scmp.lt.s32.totalorder %s256, 7
          %s260 = scalar_select %p259, %s256, 7
          %s261 = smul.addr %s258, 8
          %s262 = sadd.s32 %s260, %s261
          %s263 = smul.addr %s262, 4
          %s264 = scalar_lea.vmem %s2, %s263
          %s265 = smul.u32 8, %s26
        $region32: #{tpu_custom_call.1} parent=19 // pred_fallthru
          _
      $region20: #{tpu_custom_call.1} parent=5 // pred_fallthru
        _
      %p266 = scmp.le.s32.totalorder 1, %s18
      %p267 = scmp.lt.s32.totalorder %s18, 3
      %p268 = pnand %p266, %p267
      %p269 = pneg %p268
      // Predicated region
      $region33: #{tpu_custom_call.1} parent=5 // pred_check
        _
      $region34: #{tpu_custom_call.1} parent=5 // pred_check_branch
        %271 = sbr.rel (%p268) target = $region36
      $region35: #{tpu_custom_call.1} parent=5 // pred_region
        %s272 = ssub.s32 %s18, 1
        %s273 = smul.u32 8, %s28
        %s274 = ssub.s32 9, %s273
        %p275 = scmp.lt.s32.totalorder %s274, 8
        %s276 = scalar_select %p275, %s274, 8
        %s277 = smul.u32 4, %s276
        %p278 = scmp.lt.s32.totalorder %s27, 1
        %s279 = scalar_select %p278, %s27, 1
        %p280 = scmp.lt.s32.totalorder %s273, 8
        %s281 = scalar_select %p280, %s273, 8
        %s282 = smul.addr %s279, 9
        %s283 = sadd.s32 %s281, %s282
        %s284 = smul.addr %s283, 4
        %s285 = scalar_lea.vmem %s0, %s284
        %p286 = pneg %p58
        %p287 = pneg %p55
        %s288 = sadd.s32 %s28, 1
        %s289 = smul.u32 %s288, 8
        %p290 = scmp.lt.s32.totalorder %s27, 1
        %s291 = scalar_select %p290, %s27, 1
        %p292 = scmp.lt.s32.totalorder %s289, 8
        %s293 = scalar_select %p292, %s289, 8
        %s294 = smul.addr %s291, 9
        %s295 = sadd.s32 %s293, %s294
        %s296 = smul.addr %s295, 4
        %s297 = scalar_lea.vmem %s1, %s296
        %p298 = pneg %p90
        %p299 = pneg %p87
        %s300 = smul.u32 8, %s28
        %p301 = scmp.lt.s32.totalorder %s27, 1
        %s302 = scalar_select %p301, %s27, 1
        %p303 = scmp.lt.s32.totalorder %s300, 7
        %s304 = scalar_select %p303, %s300, 7
        %s305 = smul.addr %s302, 8
        %s306 = sadd.s32 %s304, %s305
        %s307 = smul.addr %s306, 4
        %s308 = scalar_lea.vmem %s2, %s307
        %p309 = pneg %p118
        %p310 = pneg %p115
        %p311 = pneg %p139
        %p312 = pneg %p136
        %p313 = pneg %p167
        %p314 = pneg %p164
        %s315 = sand.u32 %s154, 1
        %s316 = scalar_lea.sflag [#allocation4], %s315
        %s317 = sand.u32 %s154, 1
        %s318 = smul.addr %s317, 32
        %s319 = scalar_lea.vmem [#allocation3], %s318
        %p320 = pneg %p195
        %p321 = pneg %p192
        %s322 = sand.u32 %s182, 1
        %s323 = scalar_lea.sflag [#allocation6], %s322
        %s324 = sand.u32 %s182, 1
        %s325 = smul.addr %s324, 2
        %s326 = scalar_lea.vmem [#allocation5], %s325
        %s327 = smul.u32 8, %s28
        %s328 = ssub.s32 9, %s327
        %p329 = scmp.lt.s32.totalorder %s328, 8
        %s330 = scalar_select %p329, %s328, 8
        %s331 = smul.u32 4, %s330
        %p332 = scmp.lt.s32.totalorder %s27, 1
        %s333 = scalar_select %p332, %s27, 1
        %p334 = scmp.lt.s32.totalorder %s327, 8
        %s335 = scalar_select %p334, %s327, 8
        %s336 = smul.addr %s333, 9
        %s337 = sadd.s32 %s335, %s336
        %s338 = smul.addr %s337, 4
        %s339 = scalar_lea.vmem %s0, %s338
        %s340 = smul.u32 8, %s28
        %s341 = ssub.s32 9, %s340
        %p342 = scmp.lt.s32.totalorder %s341, 8
        %s343 = scalar_select %p342, %s341, 8
        %s344 = smul.u32 4, %s343
        %s345 = sadd.s32 %s28, 1
        %s346 = smul.u32 %s345, 8
        %p347 = scmp.lt.s32.totalorder %s27, 1
        %s348 = scalar_select %p347, %s27, 1
        %p349 = scmp.lt.s32.totalorder %s346, 8
        %s350 = scalar_select %p349, %s346, 8
        %s351 = smul.addr %s348, 9
        %s352 = sadd.s32 %s350, %s351
        %s353 = smul.addr %s352, 4
        %s354 = scalar_lea.vmem %s1, %s353
        %s355 = sadd.s32 %s28, 1
        %s356 = smul.u32 %s355, 8
        %s357 = smul.u32 8, %s28
        %p358 = scmp.lt.s32.totalorder %s27, 1
        %s359 = scalar_select %p358, %s27, 1
        %p360 = scmp.lt.s32.totalorder %s357, 7
        %s361 = scalar_select %p360, %s357, 7
        %s362 = smul.addr %s359, 8
        %s363 = sadd.s32 %s361, %s362
        %s364 = smul.addr %s363, 4
        %s365 = scalar_lea.vmem %s2, %s364
        %s366 = smul.u32 8, %s28
        %s367 = smul.u32 8, %s28
        %v369 = vld [vmem:[%s339] sm:$0xf]
        %v370 = vld [vmem:[%s339 + $0x4] sm:$0xf]
        %v371 = vld [vmem:[%s339 + $0x8] sm:$0xf]
        %v372 = vld [vmem:[%s339 + $0xc] sm:$0xf]
        %v373 = vld [vmem:[%s339 + $0x10] sm:$0xf]
        %v374 = vld [vmem:[%s339 + $0x14] sm:$0xf]
        %v375 = vld [vmem:[%s339 + $0x18] sm:$0xf]
        %v376 = vld [vmem:[%s339 + $0x1c] sm:$0xf]
        %v377 = vld [vmem:[%s3] sm:$0xf]
        %v378 = vld [vmem:[%s3 + $0x4] sm:$0x3]
        %v387 = vunpack.c.l.b16 %v369
        %v388 = vunpack.c.l.b16 %v370
        %v389 = vunpack.c.l.b16 %v371
        %v390 = vunpack.c.l.b16 %v372
        %v391 = vunpack.c.l.b16 %v373
        %v392 = vunpack.c.l.b16 %v374
        %v393 = vunpack.c.l.b16 %v375
        %v394 = vunpack.c.l.b16 %v376
        %v395 = vpack.c.b16 %v388, %v387
        %v396 = vpack.c.b16 %v390, %v389
        %v397 = vpack.c.b16 %v392, %v391
        %v398 = vpack.c.b16 %v394, %v393
        %v401 = vunpack.c.l.b16 %v377
        %v402 = vunpack.c.l.b16 %v378
        %v403 = vpack.c.b16 %v402, %v401
        %vm404 = vcmask 97280
        %v406 = vsel %vm404, %v395, 0
        %v409 = vsel %vm404, %v396, 0
        %v412 = vsel %vm404, %v397, 0
        %v415 = vsel %vm404, %v398, 0
        %vm417 = vcmask 1045504
        %v419 = vsel %vm417, %v403, 0
        %421 = vmatpush.bf16.msra.mxu0 0
        %422 = vmatpush.bf16.msra.mxu0 0
        %423 = vmatpush.bf16.msra.mxu0 0
        %424 = vmatpush.bf16.msra.mxu0 0
        %425 = vmatpush.bf16.msra.mxu0 0
        %426 = vmatpush.bf16.msra.mxu0 0
        %427 = vmatpush.bf16.msra.mxu0 0
        %428 = vmatpush.bf16.msra.mxu0 %v419
        %429 = vmatmul.bf16.gmra.mxu0 %v406
        %v430 = vpop.f32.mrf.mxu0
        %v431 = vadd.f32 0.0, %v430
        %v432 = vpop.f32.mrf.mxu0
        %v433 = vadd.f32 0.0, %v432
        %434 = vmatmul.bf16.gmra.mxu0 %v409
        %v435 = vpop.f32.mrf.mxu0
        %v436 = vadd.f32 0.0, %v435
        %v437 = vpop.f32.mrf.mxu0
        %v438 = vadd.f32 0.0, %v437
        %439 = vmatmul.bf16.gmra.mxu0 %v412
        %v440 = vpop.f32.mrf.mxu0
        %v441 = vadd.f32 0.0, %v440
        %v442 = vpop.f32.mrf.mxu0
        %v443 = vadd.f32 0.0, %v442
        %444 = vmatmul.bf16.gmra.mxu0 %v415
        %v445 = vpop.f32.mrf.mxu0
        %v446 = vadd.f32 0.0, %v445
        %v447 = vpop.f32.mrf.mxu0
        %v448 = vadd.f32 0.0, %v447
        %449 = vdwg.mxu0
        %450 = vst [vmem:[#allocation2] sm:$0xff] %v431
        %451 = vst [vmem:[#allocation2 + $0x8] sm:$0xff] %v433
        %452 = vst [vmem:[#allocation2 + $0x10] sm:$0xff] %v436
        %453 = vst [vmem:[#allocation2 + $0x18] sm:$0xff] %v438
        %454 = vst [vmem:[#allocation2 + $0x20] sm:$0xff] %v441
        %455 = vst [vmem:[#allocation2 + $0x28] sm:$0xff] %v443
        %456 = vst [vmem:[#allocation2 + $0x30] sm:$0xff] %v446
        %457 = vst [vmem:[#allocation2 + $0x38] sm:$0xff] %v448
        %v458 = vld [vmem:[#allocation2] sm:$0xff]
        %v459 = vld [vmem:[#allocation2 + $0x8] sm:$0xff]
        %v460 = vld [vmem:[#allocation2 + $0x10] sm:$0xff]
        %v461 = vld [vmem:[#allocation2 + $0x18] sm:$0xff]
        %v462 = vld [vmem:[#allocation2 + $0x20] sm:$0xff]
        %v463 = vld [vmem:[#allocation2 + $0x28] sm:$0xff]
        %v464 = vld [vmem:[#allocation2 + $0x30] sm:$0xff]
        %v465 = vld [vmem:[#allocation2 + $0x38] sm:$0xff]
        %v466 = vld [vmem:[%s365] sm:$0xf]
        %v467 = vld [vmem:[%s365 + $0x4] sm:$0xf]
        %v468 = vld [vmem:[%s365 + $0x8] sm:$0xf]
        %v469 = vld [vmem:[%s365 + $0xc] sm:$0xf]
        %v470 = vld [vmem:[%s365 + $0x10] sm:$0xf]
        %v471 = vld [vmem:[%s365 + $0x14] sm:$0xf]
        %v472 = vld [vmem:[%s365 + $0x18] sm:$0xf]
        %v473 = vld [vmem:[%s365 + $0x1c] sm:$0xf]
        %s474 = scalar_lea.vmem %s3, 8
        %v475 = vld [vmem:[%s474] sm:$0xf]
        %v476 = vld [vmem:[%s474 + $0x4] sm:$0x3]
        %v485 = vunpack.c.l.b16 %v466
        %v486 = vunpack.c.l.b16 %v467
        %v487 = vunpack.c.l.b16 %v468
        %v488 = vunpack.c.l.b16 %v469
        %v489 = vunpack.c.l.b16 %v470
        %v490 = vunpack.c.l.b16 %v471
        %v491 = vunpack.c.l.b16 %v472
        %v492 = vunpack.c.l.b16 %v473
        %v493 = vpack.c.b16 %v486, %v485
        %v494 = vpack.c.b16 %v488, %v487
        %v495 = vpack.c.b16 %v490, %v489
        %v496 = vpack.c.b16 %v492, %v491
        %v499 = vunpack.c.l.b16 %v475
        %v500 = vunpack.c.l.b16 %v476
        %v501 = vpack.c.b16 %v500, %v499
        %v503 = vsel %vm404, %v493, 0
        %v506 = vsel %vm404, %v494, 0
        %v509 = vsel %vm404, %v495, 0
        %v512 = vsel %vm404, %v496, 0
        %v515 = vsel %vm417, %v501, 0
        %517 = vmatpush.bf16.msra.mxu0 0
        %518 = vmatpush.bf16.msra.mxu0 0
        %519 = vmatpush.bf16.msra.mxu0 0
        %520 = vmatpush.bf16.msra.mxu0 0
        %521 = vmatpush.bf16.msra.mxu0 0
        %522 = vmatpush.bf16.msra.mxu0 0
        %523 = vmatpush.bf16.msra.mxu0 0
        %524 = vmatpush.bf16.msra.mxu0 %v515
        %525 = vmatmul.bf16.gmra.mxu0 %v503
        %v526 = vpop.f32.mrf.mxu0
        %v527 = vadd.f32 0.0, %v526
        %v528 = vpop.f32.mrf.mxu0
        %v529 = vadd.f32 0.0, %v528
        %530 = vmatmul.bf16.gmra.mxu0 %v506
        %v531 = vpop.f32.mrf.mxu0
        %v532 = vadd.f32 0.0, %v531
        %v533 = vpop.f32.mrf.mxu0
        %v534 = vadd.f32 0.0, %v533
        %535 = vmatmul.bf16.gmra.mxu0 %v509
        %v536 = vpop.f32.mrf.mxu0
        %v537 = vadd.f32 0.0, %v536
        %v538 = vpop.f32.mrf.mxu0
        %v539 = vadd.f32 0.0, %v538
        %540 = vmatmul.bf16.gmra.mxu0 %v512
        %v541 = vpop.f32.mrf.mxu0
        %v542 = vadd.f32 0.0, %v541
        %v543 = vpop.f32.mrf.mxu0
        %v544 = vadd.f32 0.0, %v543
        %545 = vdwg.mxu0
        %v546 = vadd.f32 %v458, %v527
        %v547 = vadd.f32 %v459, %v529
        %v548 = vadd.f32 %v460, %v532
        %v549 = vadd.f32 %v461, %v534
        %v550 = vadd.f32 %v462, %v537
        %v551 = vadd.f32 %v463, %v539
        %v552 = vadd.f32 %v464, %v542
        %v553 = vadd.f32 %v465, %v544
        %554 = vst [vmem:[#allocation2] sm:$0xff] %v546
        %555 = vst [vmem:[#allocation2 + $0x8] sm:$0xff] %v547
        %556 = vst [vmem:[#allocation2 + $0x10] sm:$0xff] %v548
        %557 = vst [vmem:[#allocation2 + $0x18] sm:$0xff] %v549
        %558 = vst [vmem:[#allocation2 + $0x20] sm:$0xff] %v550
        %559 = vst [vmem:[#allocation2 + $0x28] sm:$0xff] %v551
        %560 = vst [vmem:[#allocation2 + $0x30] sm:$0xff] %v552
        %561 = vst [vmem:[#allocation2 + $0x38] sm:$0xff] %v553
        %v562 = vld [vmem:[#allocation2] sm:$0xff]
        %v563 = vld [vmem:[#allocation2 + $0x8] sm:$0xff]
        %v564 = vld [vmem:[#allocation2 + $0x10] sm:$0xff]
        %v565 = vld [vmem:[#allocation2 + $0x18] sm:$0xff]
        %v566 = vld [vmem:[#allocation2 + $0x20] sm:$0xff]
        %v567 = vld [vmem:[#allocation2 + $0x28] sm:$0xff]
        %v568 = vld [vmem:[#allocation2 + $0x30] sm:$0xff]
        %v569 = vld [vmem:[%s339 + $0x4] sm:$0xf]
        %v570 = vld [vmem:[%s339 + $0x8] sm:$0xf]
        %v571 = vld [vmem:[%s339 + $0xc] sm:$0xf]
        %v572 = vld [vmem:[%s339 + $0x10] sm:$0xf]
        %v573 = vld [vmem:[%s339 + $0x14] sm:$0xf]
        %v574 = vld [vmem:[%s339 + $0x18] sm:$0xf]
        %v575 = vld [vmem:[%s339 + $0x1c] sm:$0xf]
        %s576 = scalar_lea.vmem %s3, 16
        %v577 = vld [vmem:[%s576] sm:$0xf]
        %v578 = vld [vmem:[%s576 + $0x4] sm:$0x3]
        %v586 = vunpack.c.l.b16 %v569
        %v587 = vunpack.c.l.b16 %v570
        %v588 = vunpack.c.l.b16 %v571
        %v589 = vunpack.c.l.b16 %v572
        %v590 = vunpack.c.l.b16 %v573
        %v591 = vunpack.c.l.b16 %v574
        %v592 = vunpack.c.l.b16 %v575
        %v593 = vpack.c.b16 %v587, %v586
        %v594 = vpack.c.b16 %v589, %v588
        %v595 = vpack.c.b16 %v591, %v590
        %v596 = vpack.c.b16 %v592, %v592
        %v599 = vunpack.c.l.b16 %v577
        %v600 = vunpack.c.l.b16 %v578
        %v601 = vpack.c.b16 %v600, %v599
        %v603 = vsel %vm404, %v593, 0
        %v606 = vsel %vm404, %v594, 0
        %v609 = vsel %vm404, %v595, 0
        %v612 = vsel %vm404, %v596, 0
        %v615 = vsel %vm417, %v601, 0
        %617 = vmatpush.bf16.msra.mxu0 0
        %618 = vmatpush.bf16.msra.mxu0 0
        %619 = vmatpush.bf16.msra.mxu0 0
        %620 = vmatpush.bf16.msra.mxu0 0
        %621 = vmatpush.bf16.msra.mxu0 0
        %622 = vmatpush.bf16.msra.mxu0 0
        %623 = vmatpush.bf16.msra.mxu0 0
        %624 = vmatpush.bf16.msra.mxu0 %v615
        %625 = vmatmul.bf16.gmra.mxu0 %v603
        %v626 = vpop.f32.mrf.mxu0
        %v627 = vadd.f32 0.0, %v626
        %v628 = vpop.f32.mrf.mxu0
        %v629 = vadd.f32 0.0, %v628
        %630 = vmatmul.bf16.gmra.mxu0 %v606
        %v631 = vpop.f32.mrf.mxu0
        %v632 = vadd.f32 0.0, %v631
        %v633 = vpop.f32.mrf.mxu0
        %v634 = vadd.f32 0.0, %v633
        %635 = vmatmul.bf16.gmra.mxu0 %v609
        %v636 = vpop.f32.mrf.mxu0
        %v637 = vadd.f32 0.0, %v636
        %v638 = vpop.f32.mrf.mxu0
        %v639 = vadd.f32 0.0, %v638
        %640 = vmatmul.bf16.gmra.mxu0 %v612
        %v641 = vpop.f32.mrf.mxu0
        %v642 = vadd.f32 0.0, %v641
        %v643 = vpop.f32.mrf.mxu0
        %644 = vdwg.mxu0
        %v645 = vadd.f32 %v562, %v627
        %v646 = vadd.f32 %v563, %v629
        %v647 = vadd.f32 %v564, %v632
        %v648 = vadd.f32 %v565, %v634
        %v649 = vadd.f32 %v566, %v637
        %v650 = vadd.f32 %v567, %v639
        %v651 = vadd.f32 %v568, %v642
        %652 = vst [vmem:[#allocation2] sm:$0xff] %v645
        %653 = vst [vmem:[#allocation2 + $0x8] sm:$0xff] %v646
        %654 = vst [vmem:[#allocation2 + $0x10] sm:$0xff] %v647
        %655 = vst [vmem:[#allocation2 + $0x18] sm:$0xff] %v648
        %656 = vst [vmem:[#allocation2 + $0x20] sm:$0xff] %v649
        %657 = vst [vmem:[#allocation2 + $0x28] sm:$0xff] %v650
        %658 = vst [vmem:[#allocation2 + $0x30] sm:$0xff] %v651
        %v659 = vld [vmem:[#allocation2 + $0x38] sm:$0xff]
        %v660 = vld [vmem:[%s354] sm:$0xf]
        %v661 = vld [vmem:[%s576] sm:$0xf]
        %v662 = vld [vmem:[%s576 + $0x4] sm:$0x3]
        %v665 = vunpack.c.l.b16 %v661
        %v666 = vunpack.c.l.b16 %v662
        %v667 = vpack.c.b16 %v666, %v665
        %v669 = vsel %vm404, %v660, 0
        %v672 = vsel %vm417, %v667, 0
        %674 = vmatpush.bf16.msra.mxu0 0
        %675 = vmatpush.bf16.msra.mxu0 0
        %676 = vmatpush.bf16.msra.mxu0 0
        %677 = vmatpush.bf16.msra.mxu0 0
        %678 = vmatpush.bf16.msra.mxu0 0
        %679 = vmatpush.bf16.msra.mxu0 0
        %680 = vmatpush.bf16.msra.mxu0 0
        %681 = vmatpush.bf16.msra.mxu0 %v672
        %682 = vmatmul.bf16.gmra.mxu0 %v669
        %v683 = vpop.f32.mrf.mxu0
        %v684 = vadd.f32 0.0, %v683
        %v685 = vpop.f32.mrf.mxu0
        %686 = vdwg.mxu0
        %v687 = vadd.f32 %v659, %v684
        %688 = vst [vmem:[#allocation2 + $0x38] sm:$0xff] %v687
        %v689 = vld [vmem:[#allocation2] sm:$0xff]
        %v690 = vld [vmem:[#allocation2 + $0x8] sm:$0xff]
        %v691 = vld [vmem:[#allocation2 + $0x10] sm:$0xff]
        %v692 = vld [vmem:[#allocation2 + $0x18] sm:$0xff]
        %v693 = vld [vmem:[#allocation2 + $0x20] sm:$0xff]
        %v694 = vld [vmem:[#allocation2 + $0x28] sm:$0xff]
        %v695 = vld [vmem:[#allocation2 + $0x30] sm:$0xff]
        %v696 = vld [vmem:[#allocation2 + $0x38] sm:$0xff]
        %v697 = vpack.c.bf16 %v689, %v689
        %v698 = vpack.c.bf16 %v690, %v690
        %v699 = vpack.c.bf16 %v691, %v691
        %v700 = vpack.c.bf16 %v692, %v692
        %v701 = vpack.c.bf16 %v693, %v693
        %v702 = vpack.c.bf16 %v694, %v694
        %v703 = vpack.c.bf16 %v695, %v695
        %v704 = vpack.c.bf16 %v696, %v696
        %705 = vst [vmem:[%s319] sm:$0xf] %v697
        %706 = vst [vmem:[%s319 + $0x4] sm:$0xf] %v698
        %707 = vst [vmem:[%s319 + $0x8] sm:$0xf] %v699
        %708 = vst [vmem:[%s319 + $0xc] sm:$0xf] %v700
        %709 = vst [vmem:[%s319 + $0x10] sm:$0xf] %v701
        %710 = vst [vmem:[%s319 + $0x14] sm:$0xf] %v702
        %711 = vst [vmem:[%s319 + $0x18] sm:$0xf] %v703
        %712 = vst [vmem:[%s319 + $0x1c] sm:$0xf] %v704
        %v713 = vadd.f32 %v689, %v690
        %v714 = vadd.f32 %v713, %v691
        %v715 = vadd.f32 %v714, %v692
        %v716 = vadd.f32 %v715, %v693
        %v717 = vadd.f32 %v716, %v694
        %v718 = vadd.f32 %v717, %v695
        %v719 = vadd.f32 %v718, %v696
        %v720 = vrot.slane %v719, 4
        %v721 = vadd.f32 %v719, %v720
        %v722 = vrot.slane %v721, 2
        %v723 = vadd.f32 %v721, %v722
        %v724 = vrot.slane %v723, 1
        %v725 = vadd.f32 %v723, %v724
        %726 = vst [vmem:[%s326] sm:$0x1] %v725
        %v727 = vmul.f32 %v689, %v689
        %v728 = vmul.f32 %v690, %v690
        %v729 = vmul.f32 %v691, %v691
        %v730 = vmul.f32 %v692, %v692
        %v731 = vmul.f32 %v693, %v693
        %v732 = vmul.f32 %v694, %v694
        %v733 = vmul.f32 %v695, %v695
        %v734 = vmul.f32 %v696, %v696
        %v735 = vadd.f32 %v727, %v728
        %v736 = vadd.f32 %v735, %v729
        %v737 = vadd.f32 %v736, %v730
        %v738 = vadd.f32 %v737, %v731
        %v739 = vadd.f32 %v738, %v732
        %v740 = vadd.f32 %v739, %v733
        %v741 = vadd.f32 %v740, %v734
        %v742 = vrot.slane %v741, 4
        %v743 = vadd.f32 %v741, %v742
        %v744 = vrot.slane %v743, 2
        %v745 = vadd.f32 %v743, %v744
        %v746 = vrot.slane %v745, 1
        %v747 = vadd.f32 %v745, %v746
        %748 = vst [vmem:[%s326 + $0x1] sm:$0x1] %v747
        %s749 = sand.u32 %s154, 1
        %s750 = scalar_lea.sflag [#allocation4], %s749
        %s751 = sand.u32 %s154, 1
        %s752 = smul.addr %s751, 32
        %s753 = scalar_lea.vmem [#allocation3], %s752
        %s754 = sand.u32 %s182, 1
        %s755 = scalar_lea.sflag [#allocation6], %s754
        %s756 = sand.u32 %s182, 1
        %s757 = smul.addr %s756, 2
        %s758 = scalar_lea.vmem [#allocation5], %s757
        // Predicated region
        $region37: #{tpu_custom_call.1} parent=35 // pred_check
          %p759 = pneg %p164
        $region38: #{tpu_custom_call.1} parent=35 // pred_check_branch
          %761 = sbr.rel (%p759) target = $region40
        $region39: #{tpu_custom_call.1} parent=35 // pred_region
          %s762 = smul.u32 8, %s28
          %764 = vsyncadd %s750, 0
          %s765 = smul.addr %s27, 8
          %s766 = sadd.s32 %s762, %s765
          %s767 = smul.addr %s766, 4
          %s768 = scalar_lea.hbm %s4, %s767
          %s769 = sshll.u32 %s753, 4
          %s770 = int_to_ptr.vmem [resolvable:$true] %s769
          %s771 = sshll.u32 %s768, 4
          %s772 = int_to_ptr.hbm [resolvable:$true] %s771
          %777 = dma.vmem_to_hbm [thread:$0]  %s770, 512, %s772, %s750, 64, 64, 4
        $region40: #{tpu_custom_call.1} parent=35 // pred_fallthru
          _
        // Predicated region
        $region41: #{tpu_custom_call.1} parent=35 // pred_check
          %p778 = pneg %p192
        $region42: #{tpu_custom_call.1} parent=35 // pred_check_branch
          %780 = sbr.rel (%p778) target = $region44
        $region43: #{tpu_custom_call.1} parent=35 // pred_region
          %782 = vsyncadd %s755, 0
          %s783 = sadd.s32 %s28, %s27
          %s784 = smul.addr %s783, 2
          %s785 = scalar_lea.hbm %s5, %s784
          %s787 = sshll.u32 %s758, 4
          %s788 = int_to_ptr.vmem [resolvable:$true] %s787
          %s789 = sshll.u32 %s785, 4
          %s790 = int_to_ptr.hbm [resolvable:$true] %s789
          %792 = dma.vmem_to_hbm [thread:$0]  %s788, 32, %s790, %s755
        $region44: #{tpu_custom_call.1} parent=35 // pred_fallthru
          _
      $region36: #{tpu_custom_call.1} parent=5 // pred_fallthru
        _
      %p793 = scmp.le.s32.totalorder 2, %s18
      // Predicated region
      $region45: #{tpu_custom_call.1} parent=5 // pred_check
        %p794 = pneg %p793
      $region46: #{tpu_custom_call.1} parent=5 // pred_check_branch
        %796 = sbr.rel (%p794) target = $region48
      $region47: #{tpu_custom_call.1} parent=5 // pred_region
        %s797 = ssub.s32 %s18, 2
        // Predicated region
        $region49: #{tpu_custom_call.1} parent=47 // pred_check
          %p798 = pneg %p170
        $region50: #{tpu_custom_call.1} parent=47 // pred_check_branch
          %800 = sbr.rel (%p798) target = $region52
        $region51: #{tpu_custom_call.1} parent=47 // pred_region
          %s801 = sand.u32 %s155, 1
          %s802 = scalar_lea.sflag [#allocation4], %s801
          %s803 = sand.u32 %s155, 1
          %s804 = smul.addr %s803, 32
          %s805 = scalar_lea.vmem [#allocation3], %s804
          %807 = dma.done %s802, 512
        $region52: #{tpu_custom_call.1} parent=47 // pred_fallthru
          _
        // Predicated region
        $region53: #{tpu_custom_call.1} parent=47 // pred_check
          %p808 = pneg %p198
        $region54: #{tpu_custom_call.1} parent=47 // pred_check_branch
          %810 = sbr.rel (%p808) target = $region56
        $region55: #{tpu_custom_call.1} parent=47 // pred_region
          %s811 = sand.u32 %s183, 1
          %s812 = scalar_lea.sflag [#allocation6], %s811
          %s813 = sand.u32 %s183, 1
          %s814 = smul.addr %s813, 2
          %s815 = scalar_lea.vmem [#allocation5], %s814
          %817 = dma.done %s812, 32
        $region56: #{tpu_custom_call.1} parent=47 // pred_fallthru
          _
      $region48: #{tpu_custom_call.1} parent=5 // pred_fallthru
        _
    $region6: #{tpu_custom_call.1} parent=1 // loop_footer
      %s22 = sadd.s32 1, %s18
    $region7: #{tpu_custom_call.1} parent=1 // loop_footer_branch
      %17 = sbr.rel target = $region3
    $region8: #{tpu_custom_call.1} parent=1 // loop_exit
      _
    %818 = vsyncpa [#allocation4], 1
    %s819 = scalar_lea.sflag [#allocation4], 1
    %820 = vsyncpa %s819, 1
    %821 = vsyncpa [#allocation6], 1
    %s822 = scalar_lea.sflag [#allocation6], 1
    %823 = vsyncpa %s822, 1

</llo_original>
